<compile_context>
chip_gen: v6e
topology: v6e:2x2x1
jax: 0.10.0
libtpu: 0.0.40
codegen_flags: <defaults>
</compile_context>

<pallas_src>
import jax
import jax.numpy as jnp
from jax.experimental import pallas as pl
from jax.experimental.pallas import tpu as pltpu


def _round_up(n, m):
    return ((n + m - 1) // m) * m


def _make_rnn_kernel(t_total, t_chunk):
    static_steps = (t_total % t_chunk) == 0

    def kernel(x_ref, w_ref, r_ref, b_ref, h0_ref, h_ref, xw_ref):
        ci = pl.program_id(1)  # serial time-chunk axis

        # Seed the resident hidden-state block from h0 on the first chunk of
        # each batch tile.
        @pl.when(ci == 0)
        def _():
            h_ref[...] = h0_ref[...]

        tc, tb, d = x_ref.shape  # static block shape

        # Whole-chunk input projection: one MXU matmul (bf16 in, f32 acc) with
        # the bias folded in once per chunk.  Stored to VMEM scratch so the
        # serial loop below only touches one (tb, Hp) slice per step.
        xw_ref[...] = (
            jnp.dot(
                x_ref[...].reshape(tc * tb, d),
                w_ref[...],
                preferred_element_type=jnp.float32,
            )
            + b_ref[...]  # (1, Hp) broadcasts over rows, f32
        )

        r = r_ref[...]  # recurrent weights, resident (bf16)

        # Serial recurrence.  Ragged last chunk -> dynamic trip count, so no
        # per-step select sits on the dependency chain of full chunks.
        if static_steps:
            steps = t_chunk
        else:
            steps = jnp.minimum(t_chunk, t_total - ci * t_chunk)

        def body(t, h):
            row = pl.multiple_of(t * tb, 8)  # tb % 8 == 0 -> aligned slice
            pre = xw_ref[pl.ds(row, tb), :] + jnp.dot(
                h.astype(r.dtype), r, preferred_element_type=jnp.float32
            )
            return jnp.tanh(pre)  # f32 elementwise (EUP)

        # NOTE: if a bundle dump shows a per-step MXU weight push for R, stage
        # it once per chunk via pltpu.matmul_push_rhs/acc_lhs/pop (Hp<=256).
        h_ref[...] = jax.lax.fori_loop(0, steps, body, h_ref[...])

    return kernel


def rnn_layer(x, W, R, b, h0, *, t_chunk=None, batch_tile=None,
              matmul_dtype=jnp.bfloat16):
    """x: [T, B, D], W: [D, H], R: [H, H], b: [H], h0: [B, H] -> [B, H]."""
    T, B, D = x.shape
    H = W.shape[1]
    out_dtype = h0.dtype

    if T == 0:
        return jnp.broadcast_to(jnp.asarray(h0, out_dtype), (B, H))

    # ---- tile sizing -------------------------------------------------------
    if batch_tile is None:
        batch_tile = B if B <= 128 else 64  # split batch only when it is big
    tb = _round_up(min(batch_tile, B), 8)
    Bp = _round_up(B, tb)
    Dp = _round_up(D, 128)
    Hp = _round_up(H, 128)
    if t_chunk is None:
        # Target >= 512 rows for the per-chunk x@W projection (fills the MXU
        # on all generations; v5e's 4x128x128 MXUs want the most rows).
        t_chunk = max(8, min(128, -(-512 // tb)))
    tc = max(1, min(t_chunk, T))
    Tp = _round_up(T, tc)

    f32 = jnp.float32

    # ---- pad / cast operands (skip the extra HBM pass when already aligned) -
    def _pad(a, shape, dtype):
        a = a.astype(dtype)
        if a.shape == shape:
            return a
        idx = tuple(slice(0, s) for s in a.shape)
        return jnp.zeros(shape, dtype).at[idx].set(a)

    xp = _pad(x, (Tp, Bp, Dp), matmul_dtype)    # streamed (bf16)
    Wp = _pad(W, (Dp, Hp), matmul_dtype)        # resident (bf16)
    Rp = _pad(R, (Hp, Hp), matmul_dtype)        # resident (bf16)
    bp = _pad(b.reshape(1, H), (1, Hp), f32)    # bias added post-MXU in f32
    h0p = _pad(h0, (Bp, Hp), f32)               # hidden state stays f32

    # ---- VMEM budget (double-buffered x chunk, resident weights, scratch) ---
    isz = jnp.dtype(matmul_dtype).itemsize
    vmem_est = (
        2 * tc * tb * Dp * isz                  # x chunk, double-buffered
        + 2 * (Dp * Hp + Hp * Hp) * isz         # W, R (worst case 2 buffers)
        + tc * tb * Hp * 4                      # xw scratch
        + 2 * 2 * tb * Hp * 4                   # h0 + h output
        + 2 * Hp * 4                            # bias
    )
    vmem_limit = int(min(100 * 1024 * 1024, max(16 * 1024 * 1024, 1.3 * vmem_est)))

    grid = (Bp // tb, Tp // tc)

    out = pl.pallas_call(
        _make_rnn_kernel(T, tc),
        out_shape=jax.ShapeDtypeStruct((Bp, Hp), f32),
        grid_spec=pltpu.PrefetchScalarGridSpec(
            num_scalar_prefetch=0,
            grid=grid,
            in_specs=[
                pl.BlockSpec((tc, tb, Dp), lambda bi, ci: (ci, bi, 0)),  # x chunk
                pl.BlockSpec((Dp, Hp), lambda bi, ci: (0, 0)),           # W resident
                pl.BlockSpec((Hp, Hp), lambda bi, ci: (0, 0)),           # R resident
                pl.BlockSpec((1, Hp), lambda bi, ci: (0, 0)),            # b resident
                pl.BlockSpec((tb, Hp), lambda bi, ci: (bi, 0)),          # h0
            ],
            out_specs=pl.BlockSpec((tb, Hp), lambda bi, ci: (bi, 0)),    # h accumulator
            scratch_shapes=[pltpu.VMEM((tc * tb, Hp), jnp.float32)],     # chunk x@W+b
        ),
        compiler_params=pltpu.CompilerParams(
            # Batch tiles are independent (megacore-parallel on v7x); the time
            # axis carries the recurrence and must stay serial.
            dimension_semantics=("parallel", "arbitrary"),
            vmem_limit_bytes=vmem_limit,
        ),
    )(xp, Wp, Rp, bp, h0p)

    return out[:B, :H].astype(out_dtype)


def rnn_layer_ref(x, W, R, b, h0):
    """Pure-JAX f32 reference matching the PyTorch forward."""
    h = h0
    for t in range(x.shape[0]):
        h = jnp.tanh(x[t] @ W + h @ R + b)
    return h


if __name__ == "__main__":
    key = jax.random.PRNGKey(0)
    kx, kw, kr, kb, kh = jax.random.split(key, 5)

    # Case 1: aligned, small shapes.
    T, B, D, H = 8, 8, 16, 32
    x = jax.random.normal(kx, (T, B, D), dtype=jnp.float32)
    W = jax.random.normal(kw, (D, H), dtype=jnp.float32) * 0.1
    R = jax.random.normal(kr, (H, H), dtype=jnp.float32) * 0.1
    b = jax.random.normal(kb, (H,), dtype=jnp.float32) * 0.1
    h0 = jax.random.normal(kh, (B, H), dtype=jnp.float32) * 0.1

    out = jax.block_until_ready(rnn_layer(x, W, R, b, h0))
    ref = rnn_layer_ref(x, W, R, b, h0)
    assert out.shape == (B, H)
    # bf16 matmul operands with f32 accumulation (intentional, MXU-native).
    assert jnp.max(jnp.abs(out - ref)) < 2e-2, "mismatch vs reference (case 1)"

    # Case 2: ragged T and unaligned B/D/H, exercising the padded + dynamic
    # trip-count path (explicit small t_chunk to force a ragged last chunk).
    T2, B2, D2, H2 = 13, 5, 20, 40
    x2 = jax.random.normal(kx, (T2, B2, D2), dtype=jnp.float32)
    W2 = jax.random.normal(kw, (D2, H2), dtype=jnp.float32) * 0.1
    R2 = jax.random.normal(kr, (H2, H2), dtype=jnp.float32) * 0.1
    b2 = jax.random.normal(kb, (H2,), dtype=jnp.float32) * 0.1
    h02 = jax.random.normal(kh, (B2, H2), dtype=jnp.float32) * 0.1

    out2 = jax.block_until_ready(rnn_layer(x2, W2, R2, b2, h02, t_chunk=8))
    ref2 = rnn_layer_ref(x2, W2, R2, b2, h02)
    assert out2.shape == (B2, H2)
    assert jnp.max(jnp.abs(out2 - ref2)) < 2e-2, "mismatch vs reference (case 2)"

    print("KERNEL_OK")
</pallas_src>

<mosaic_0001>
module attributes {stable_mosaic.version = 11 : i64} {
  func.func @kernel(%arg0: i32, %arg1: i32, %arg2: memref<8x8x128xbf16, #tpu.memory_space<vmem>>, %arg3: memref<128x128xbf16, #tpu.memory_space<vmem>>, %arg4: memref<128x128xbf16, #tpu.memory_space<vmem>>, %arg5: memref<1x128xf32, #tpu.memory_space<vmem>>, %arg6: memref<8x128xf32, #tpu.memory_space<vmem>>, %arg7: memref<8x128xf32, #tpu.memory_space<vmem>>, %arg8: memref<64x128xf32, #tpu.memory_space<vmem>>) attributes {dimension_semantics = [#tpu.dimension_semantics<parallel>, #tpu.dimension_semantics<arbitrary>], iteration_bounds = array<i64: 1, 1>, scalar_prefetch = 0 : i64, scratch_operands = 1 : i64, tpu.core_type = #tpu.core_type<tc>, window_params = [{transform_indices = @transform_0, window_bounds = array<i64: 8, 8, 128>}, {pipeline_mode = #tpu.pipeline_mode<synchronous>, transform_indices = @transform_1, window_bounds = array<i64: 128, 128>}, {pipeline_mode = #tpu.pipeline_mode<synchronous>, transform_indices = @transform_2, window_bounds = array<i64: 128, 128>}, {pipeline_mode = #tpu.pipeline_mode<synchronous>, transform_indices = @transform_3, window_bounds = array<i64: 1, 128>}, {transform_indices = @transform_4, window_bounds = array<i64: 8, 128>}, {transform_indices = @transform_5, window_bounds = array<i64: 8, 128>}]} {
    %c0_i32 = arith.constant 0 : i32
    %0 = arith.cmpi eq, %arg1, %c0_i32 : i32
    %1 = arith.extui %0 : i1 to i32
    %c0_i32_0 = arith.constant 0 : i32
    %2 = arith.cmpi ne, %1, %c0_i32_0 : i32
    scf.if %2 {
      %c0_17 = arith.constant 0 : index
      %c0_18 = arith.constant 0 : index
      %16 = vector.load %arg6[%c0_17, %c0_18] : memref<8x128xf32, #tpu.memory_space<vmem>>, vector<8x128xf32>
      %c0_19 = arith.constant 0 : index
      %c0_20 = arith.constant 0 : index
      %17 = vector.load %arg7[%c0_19, %c0_20] : memref<8x128xf32, #tpu.memory_space<vmem>>, vector<8x128xf32>
      tpu.vector_store %arg7[%c0_19, %c0_20], %16 {strides = array<i32>} : memref<8x128xf32, #tpu.memory_space<vmem>>, vector<8x128xf32>,
    } else {
    }
    %c0 = arith.constant 0 : index
    %c0_1 = arith.constant 0 : index
    %c0_2 = arith.constant 0 : index
    %3 = vector.load %arg2[%c0, %c0_1, %c0_2] : memref<8x8x128xbf16, #tpu.memory_space<vmem>>, vector<8x8x128xbf16>
    %4 = vector.shape_cast %3 : vector<8x8x128xbf16> to vector<64x128xbf16>
    %c0_3 = arith.constant 0 : index
    %c0_4 = arith.constant 0 : index
    %5 = vector.load %arg3[%c0_3, %c0_4] : memref<128x128xbf16, #tpu.memory_space<vmem>>, vector<128x128xbf16>
    %cst = arith.constant dense<0.000000e+00> : vector<64x128xf32>
    %6 = tpu.matmul %4, %5, %cst {dimension_numbers = #tpu.dot_dimension_numbers<[1], [0], [0], [1], [0, 0, 1, 1], [], []>} : vector<64x128xbf16>, vector<128x128xbf16>, vector<64x128xf32> -> vector<64x128xf32>
    %c0_5 = arith.constant 0 : index
    %c0_6 = arith.constant 0 : index
    %7 = vector.load %arg5[%c0_5, %c0_6] : memref<1x128xf32, #tpu.memory_space<vmem>>, vector<1x128xf32>
    %8 = vector.broadcast %7 : vector<1x128xf32> to vector<64x128xf32>
    %9 = arith.addf %6, %8 : vector<64x128xf32>
    %c0_7 = arith.constant 0 : index
    %c0_8 = arith.constant 0 : index
    %10 = vector.load %arg8[%c0_7, %c0_8] : memref<64x128xf32, #tpu.memory_space<vmem>>, vector<64x128xf32>
    tpu.vector_store %arg8[%c0_7, %c0_8], %9 {strides = array<i32>} : memref<64x128xf32, #tpu.memory_space<vmem>>, vector<64x128xf32>,
    %c0_9 = arith.constant 0 : index
    %c0_10 = arith.constant 0 : index
    %11 = vector.load %arg4[%c0_9, %c0_10] : memref<128x128xbf16, #tpu.memory_space<vmem>>, vector<128x128xbf16>
    %c0_11 = arith.constant 0 : index
    %c0_12 = arith.constant 0 : index
    %12 = vector.load %arg7[%c0_11, %c0_12] : memref<8x128xf32, #tpu.memory_space<vmem>>, vector<8x128xf32>
    %c0_i32_13 = arith.constant 0 : i32
    %c8_i32 = arith.constant 8 : i32
    %13 = arith.addi %c0_i32_13, %c8_i32 : i32
    %c1_i32 = arith.constant 1 : i32
    %14 = scf.for %arg9 = %c0_i32_13 to %13 step %c1_i32 iter_args(%arg10 = %12) -> (vector<8x128xf32>)  : i32 {
      %c8_i32_17 = arith.constant 8 : i32
      %16 = arith.muli %arg9, %c8_i32_17 : i32
      %17 = tpu.assume_multiple %16, 8 : i32
      %18 = arith.index_cast %17 : i32 to index
      %c0_18 = arith.constant 0 : index
      %19 = vector.load %arg8[%18, %c0_18] : memref<64x128xf32, #tpu.memory_space<vmem>>, vector<8x128xf32>
      %20 = arith.truncf %arg10 : vector<8x128xf32> to vector<8x128xbf16>
      %cst_19 = arith.constant dense<0.000000e+00> : vector<8x128xf32>
      %21 = tpu.matmul %20, %11, %cst_19 {dimension_numbers = #tpu.dot_dimension_numbers<[1], [0], [0], [1], [0, 0, 1, 1], [], []>} : vector<8x128xbf16>, vector<128x128xbf16>, vector<8x128xf32> -> vector<8x128xf32>
      %22 = arith.addf %19, %21 : vector<8x128xf32>
      %23 = math.tanh %22 : vector<8x128xf32>
      scf.yield %23 : vector<8x128xf32>
    }
    %c8_i32_14 = arith.constant 8 : i32
    %c0_15 = arith.constant 0 : index
    %c0_16 = arith.constant 0 : index
    %15 = vector.load %arg7[%c0_15, %c0_16] : memref<8x128xf32, #tpu.memory_space<vmem>>, vector<8x128xf32>
    tpu.vector_store %arg7[%c0_15, %c0_16], %14 {strides = array<i32>} : memref<8x128xf32, #tpu.memory_space<vmem>>, vector<8x128xf32>,
    return
  }
  func.func @transform_0(%arg0: i32, %arg1: i32) -> (i32, i32, i32) {
    %c0_i32 = arith.constant 0 : i32
    %c0_i32_0 = arith.constant 0 : i32
    return %arg1, %arg0, %c0_i32 : i32, i32, i32
  }
  func.func @transform_1(%arg0: i32, %arg1: i32) -> (i32, i32) {
    %c0_i32 = arith.constant 0 : i32
    %c0_i32_0 = arith.constant 0 : i32
    %c0_i32_1 = arith.constant 0 : i32
    return %c0_i32, %c0_i32_0 : i32, i32
  }
  func.func @transform_2(%arg0: i32, %arg1: i32) -> (i32, i32) {
    %c0_i32 = arith.constant 0 : i32
    %c0_i32_0 = arith.constant 0 : i32
    %c0_i32_1 = arith.constant 0 : i32
    return %c0_i32, %c0_i32_0 : i32, i32
  }
  func.func @transform_3(%arg0: i32, %arg1: i32) -> (i32, i32) {
    %c0_i32 = arith.constant 0 : i32
    %c0_i32_0 = arith.constant 0 : i32
    %c0_i32_1 = arith.constant 0 : i32
    return %c0_i32, %c0_i32_0 : i32, i32
  }
  func.func @transform_4(%arg0: i32, %arg1: i32) -> (i32, i32) {
    %c0_i32 = arith.constant 0 : i32
    %c0_i32_0 = arith.constant 0 : i32
    return %arg0, %c0_i32 : i32, i32
  }
  func.func @transform_5(%arg0: i32, %arg1: i32) -> (i32, i32) {
    %c0_i32 = arith.constant 0 : i32
    %c0_i32_0 = arith.constant 0 : i32
    return %arg0, %c0_i32 : i32, i32
  }
}

</mosaic_0001>

<llo_original>
// kernel: tpu_custom_call.1
$region0: #{tpu_custom_call.1}
  #allocation0 [shape = 'u32[]', space=smem, size = 0x4, offset = 0x4, fixed_abs, tag = 'smem constant byte address 0x4 - core index']
  #allocation1 [shape = 'u32[144,128]{1,0:T(1,128)}', space=vmem, size = 0x12000, scoped, tag = 'internal scratch']
  #allocation2 [shape = 'f32[64,128]{1,0:T(8,128)}', space=vmem, size = 0x8000, scoped, tag = 'scratch operand']
  %s0 = inlined_call_operand.hbm [shape: bf16[8,8,128], index: 0, kind: input, shape index: {}]
  %s1 = inlined_call_operand.hbm [shape: bf16[128,128], index: 1, kind: input, shape index: {}]
  %s2 = inlined_call_operand.hbm [shape: bf16[128,128], index: 2, kind: input, shape index: {}]
  %s3 = inlined_call_operand.vmem [shape: f32[1,128], index: 3, kind: input, shape index: {}]
  %s4 = inlined_call_operand.hbm [shape: f32[8,128], index: 4, kind: input, shape index: {}]
  %s5 = inlined_call_operand.hbm [shape: f32[8,128], index: 5, kind: output, shape index: {}]
  %s6 = sld [smem:[#allocation0]]
  $region57: #{tpu_custom_call.1} parent=0
    _
  %s8 = ssub.s32 1, %s6
  %s9 = scalar_select 0, %s8, %s6
  $region1: #{tpu_custom_call.1} parent=0
    #allocation3 [shape = 'u8[16384]{0}', space=vmem, size = 0x4000, scoped, tag = 'input window, operand 0, single buffered']
    #allocation4 [shape = 's32[1]{0}', space=sflag, size = 0x4, scoped, tag = 'scoped memory for tpu_custom_call.1']
    #allocation5 [shape = 's32[1]{0}', space=sflag, size = 0x4, scoped, tag = 'scoped memory for tpu_custom_call.1']
    #allocation6 [shape = 'u8[32768]{0}', space=vmem, size = 0x8000, scoped, tag = 'input window, operand 1, single buffered']
    #allocation7 [shape = 's32[1]{0}', space=sflag, size = 0x4, scoped, tag = 'scoped memory for tpu_custom_call.1']
    #allocation8 [shape = 'u8[32768]{0}', space=vmem, size = 0x8000, scoped, tag = 'input window, operand 2, single buffered']
    #allocation9 [shape = 'u8[4096]{0}', space=vmem, size = 0x1000, scoped, tag = 'input window, operand 4, single buffered']
    #allocation10 [shape = 's32[1]{0}', space=sflag, size = 0x4, scoped, tag = 'scoped memory for tpu_custom_call.1']
    #allocation11 [shape = 'u8[4096]{0}', space=vmem, size = 0x1000, scoped, tag = 'output window, operand 0, single buffered']
    %10 = vsyncpa [#allocation4], 0
    %11 = vsyncpa [#allocation7], 0
    %12 = vsyncpa [#allocation10], 0
    %13 = vsyncpa [#allocation5], 0
    // Predicated region
    $region2: #{tpu_custom_call.1} parent=1 // pred_check
      _
    $region3: #{tpu_custom_call.1} parent=1 // pred_check_branch
      %15 = sbr.rel (0) target = $region5
    $region4: #{tpu_custom_call.1} parent=1 // pred_region
      %s17 = ssub.s32 512, 512
      %18 = vsyncadd [#allocation4], %s17
      %s19 = sshll.u32 [#allocation3], 4
      %s20 = int_to_ptr.vmem [resolvable:$true] %s19
      %25 = dma.hbm_to_vmem [thread:$0]  %s0, 512, %s20, [#allocation4], 64, 64, 4
    $region5: #{tpu_custom_call.1} parent=1 // pred_fallthru
      _
    // Predicated region
    $region6: #{tpu_custom_call.1} parent=1 // pred_check
      _
    $region7: #{tpu_custom_call.1} parent=1 // pred_check_branch
      %27 = sbr.rel (0) target = $region9
    $region8: #{tpu_custom_call.1} parent=1 // pred_region
      %s29 = ssub.s32 1024, 1024
      %30 = vsyncadd [#allocation7], %s29
      %s31 = sshll.u32 [#allocation6], 4
      %s32 = int_to_ptr.vmem [resolvable:$true] %s31
      %37 = dma.hbm_to_vmem [thread:$0]  %s1, 1024, %s32, [#allocation7], 64, 64, 4
    $region9: #{tpu_custom_call.1} parent=1 // pred_fallthru
      _
    // Predicated region
    $region10: #{tpu_custom_call.1} parent=1 // pred_check
      _
    $region11: #{tpu_custom_call.1} parent=1 // pred_check_branch
      %39 = sbr.rel (0) target = $region13
    $region12: #{tpu_custom_call.1} parent=1 // pred_region
      %s41 = ssub.s32 1024, 1024
      %42 = vsyncadd [#allocation7], %s41
      %s43 = sshll.u32 [#allocation8], 4
      %s44 = int_to_ptr.vmem [resolvable:$true] %s43
      %49 = dma.hbm_to_vmem [thread:$0]  %s2, 1024, %s44, [#allocation7], 64, 64, 4
    $region13: #{tpu_custom_call.1} parent=1 // pred_fallthru
      _
    // Predicated region
    $region14: #{tpu_custom_call.1} parent=1 // pred_check
      _
    $region15: #{tpu_custom_call.1} parent=1 // pred_check_branch
      %51 = sbr.rel (0) target = $region17
    $region16: #{tpu_custom_call.1} parent=1 // pred_region
      _
    $region17: #{tpu_custom_call.1} parent=1 // pred_fallthru
      _
    // Predicated region
    $region18: #{tpu_custom_call.1} parent=1 // pred_check
      _
    $region19: #{tpu_custom_call.1} parent=1 // pred_check_branch
      %53 = sbr.rel (0) target = $region21
    $region20: #{tpu_custom_call.1} parent=1 // pred_region
      %s55 = ssub.s32 128, 128
      %56 = vsyncadd [#allocation10], %s55
      %s58 = sshll.u32 [#allocation9], 4
      %s59 = int_to_ptr.vmem [resolvable:$true] %s58
      %61 = dma.hbm_to_vmem [thread:$0]  %s4, 128, %s59, [#allocation10]
    $region21: #{tpu_custom_call.1} parent=1 // pred_fallthru
      _
    // Predicated region
    $region22: #{tpu_custom_call.1} parent=1 // pred_check
      _
    $region23: #{tpu_custom_call.1} parent=1 // pred_check_branch
      %63 = sbr.rel (0) target = $region25
    $region24: #{tpu_custom_call.1} parent=1 // pred_region
      %64 = dma.done [#allocation4], 512
    $region25: #{tpu_custom_call.1} parent=1 // pred_fallthru
      _
    // Predicated region
    $region26: #{tpu_custom_call.1} parent=1 // pred_check
      _
    $region27: #{tpu_custom_call.1} parent=1 // pred_check_branch
      %66 = sbr.rel (0) target = $region29
    $region28: #{tpu_custom_call.1} parent=1 // pred_region
      %67 = dma.done [#allocation7], 1024
    $region29: #{tpu_custom_call.1} parent=1 // pred_fallthru
      _
    // Predicated region
    $region30: #{tpu_custom_call.1} parent=1 // pred_check
      _
    $region31: #{tpu_custom_call.1} parent=1 // pred_check_branch
      %69 = sbr.rel (0) target = $region33
    $region32: #{tpu_custom_call.1} parent=1 // pred_region
      %70 = dma.done [#allocation7], 1024
    $region33: #{tpu_custom_call.1} parent=1 // pred_fallthru
      _
    // Predicated region
    $region34: #{tpu_custom_call.1} parent=1 // pred_check
      _
    $region35: #{tpu_custom_call.1} parent=1 // pred_check_branch
      %72 = sbr.rel (0) target = $region37
    $region36: #{tpu_custom_call.1} parent=1 // pred_region
      %73 = dma.done [#allocation10], 128
    $region37: #{tpu_custom_call.1} parent=1 // pred_fallthru
      _
    %p75 = scmp.eq.s32.totalorder 0, 0
    // Predicated region
    $region38: #{tpu_custom_call.1} parent=1 // pred_check
      %p76 = pneg %p75
    $region39: #{tpu_custom_call.1} parent=1 // pred_check_branch
      %78 = sbr.rel (%p76) target = $region41
    $region40: #{tpu_custom_call.1} parent=1 // pred_region
      %v79 = vld [vmem:[#allocation9] sm:$0xff]
      %80 = vst [vmem:[#allocation11] sm:$0xff] %v79
    $region41: #{tpu_custom_call.1} parent=1 // pred_fallthru
      _
    %v81 = vld [vmem:[#allocation3] sm:$0xf]
    %v82 = vld [vmem:[#allocation3 + $0x4] sm:$0xf]
    %v83 = vld [vmem:[#allocation3 + $0x8] sm:$0xf]
    %v84 = vld [vmem:[#allocation3 + $0xc] sm:$0xf]
    %v85 = vld [vmem:[#allocation3 + $0x10] sm:$0xf]
    %v86 = vld [vmem:[#allocation3 + $0x14] sm:$0xf]
    %v87 = vld [vmem:[#allocation3 + $0x18] sm:$0xf]
    %v88 = vld [vmem:[#allocation3 + $0x1c] sm:$0xf]
    %v89 = vld [vmem:[#allocation6] sm:$0xf]
    %v90 = vld [vmem:[#allocation6 + $0x4] sm:$0xf]
    %v91 = vld [vmem:[#allocation6 + $0x8] sm:$0xf]
    %v92 = vld [vmem:[#allocation6 + $0xc] sm:$0xf]
    %v93 = vld [vmem:[#allocation6 + $0x10] sm:$0xf]
    %v94 = vld [vmem:[#allocation6 + $0x14] sm:$0xf]
    %v95 = vld [vmem:[#allocation6 + $0x18] sm:$0xf]
    %v96 = vld [vmem:[#allocation6 + $0x1c] sm:$0xf]
    %v97 = vld [vmem:[#allocation6 + $0x20] sm:$0xf]
    %v98 = vld [vmem:[#allocation6 + $0x24] sm:$0xf]
    %v99 = vld [vmem:[#allocation6 + $0x28] sm:$0xf]
    %v100 = vld [vmem:[#allocation6 + $0x2c] sm:$0xf]
    %v101 = vld [vmem:[#allocation6 + $0x30] sm:$0xf]
    %v102 = vld [vmem:[#allocation6 + $0x34] sm:$0xf]
    %v103 = vld [vmem:[#allocation6 + $0x38] sm:$0xf]
    %v104 = vld [vmem:[#allocation6 + $0x3c] sm:$0xf]
    %v105 = vld [vmem:[%s3] sm:$0x1]
    %v107 = vlaneseq
    %v108 = vshrl.u32 %v107, 7
    %v109 = vsub.s32 0, %v108
    %v110 = vrot.slane %v105, %v109
    %v120 = vunpack.c.l.b16 %v81
    %v121 = vunpack.c.l.b16 %v82
    %v122 = vunpack.c.l.b16 %v83
    %v123 = vunpack.c.l.b16 %v84
    %v124 = vunpack.c.l.b16 %v85
    %v125 = vunpack.c.l.b16 %v86
    %v126 = vunpack.c.l.b16 %v87
    %v127 = vunpack.c.l.b16 %v88
    %v128 = vpack.c.b16 %v121, %v120
    %v129 = vpack.c.b16 %v123, %v122
    %v130 = vpack.c.b16 %v125, %v124
    %v131 = vpack.c.b16 %v127, %v126
    %v152 = vunpack.c.l.b16 %v89
    %v153 = vunpack.c.l.b16 %v90
    %v154 = vunpack.c.l.b16 %v91
    %v155 = vunpack.c.l.b16 %v92
    %v156 = vunpack.c.l.b16 %v93
    %v157 = vunpack.c.l.b16 %v94
    %v158 = vunpack.c.l.b16 %v95
    %v159 = vunpack.c.l.b16 %v96
    %v160 = vunpack.c.l.b16 %v97
    %v161 = vunpack.c.l.b16 %v98
    %v162 = vunpack.c.l.b16 %v99
    %v163 = vunpack.c.l.b16 %v100
    %v164 = vunpack.c.l.b16 %v101
    %v165 = vunpack.c.l.b16 %v102
    %v166 = vunpack.c.l.b16 %v103
    %v167 = vunpack.c.l.b16 %v104
    %v168 = vpack.c.b16 %v153, %v152
    %v169 = vpack.c.b16 %v155, %v154
    %v170 = vpack.c.b16 %v157, %v156
    %v171 = vpack.c.b16 %v159, %v158
    %v172 = vpack.c.b16 %v161, %v160
    %v173 = vpack.c.b16 %v163, %v162
    %v174 = vpack.c.b16 %v165, %v164
    %v175 = vpack.c.b16 %v167, %v166
    %184 = vmatprep.subr.bf16.mxu0 0
    %185 = vmatpush1.bf16.msra.mxu0 %v175
    %186 = vmatprep.subr.bf16.mxu0 0
    %187 = vmatpush1.bf16.msra.mxu0 %v174
    %188 = vmatprep.subr.bf16.mxu0 0
    %189 = vmatpush1.bf16.msra.mxu0 %v173
    %190 = vmatprep.subr.bf16.mxu0 0
    %191 = vmatpush1.bf16.msra.mxu0 %v172
    %192 = vmatprep.subr.bf16.mxu0 0
    %193 = vmatpush1.bf16.msra.mxu0 %v171
    %194 = vmatprep.subr.bf16.mxu0 0
    %195 = vmatpush1.bf16.msra.mxu0 %v170
    %196 = vmatprep.subr.bf16.mxu0 0
    %197 = vmatpush1.bf16.msra.mxu0 %v169
    %198 = vmatprep.subr.bf16.mxu0 0
    %199 = vmatpush1.bf16.msra.mxu0 %v168
    %200 = vmatprep.subr.bf16.mxu0 0
    %201 = vmatpush2.bf16.msra.mxu0 0
    %202 = vmatprep.subr.bf16.mxu0 0
    %203 = vmatpush2.bf16.msra.mxu0 0
    %204 = vmatprep.subr.bf16.mxu0 0
    %205 = vmatpush2.bf16.msra.mxu0 0
    %206 = vmatprep.subr.bf16.mxu0 0
    %207 = vmatpush2.bf16.msra.mxu0 0
    %208 = vmatprep.subr.bf16.mxu0 0
    %209 = vmatpush2.bf16.msra.mxu0 0
    %210 = vmatprep.subr.bf16.mxu0 0
    %211 = vmatpush2.bf16.msra.mxu0 0
    %212 = vmatprep.subr.bf16.mxu0 0
    %213 = vmatpush2.bf16.msra.mxu0 0
    %214 = vmatprep.subr.bf16.mxu0 0
    %215 = vmatpush2.bf16.msra.mxu0 0
    %216 = vmatprep.mubr.bf16.mxu0 0
    %217 = vmatmul.mubr.bf16.gmra.mxu0 %v128
    %v218 = vpop.f32.mrf.mxu0
    %v219 = vadd.f32 %v110, %v218
    %v220 = vpop.f32.mrf.mxu0
    %v221 = vpop.f32.mrf.mxu0
    %v222 = vadd.f32 %v110, %v221
    %v223 = vpop.f32.mrf.mxu0
    %224 = vmatprep.mubr.bf16.mxu0 0
    %225 = vmatmul.mubr.bf16.gmra.mxu0 %v129
    %v226 = vpop.f32.mrf.mxu0
    %v227 = vadd.f32 %v110, %v226
    %v228 = vpop.f32.mrf.mxu0
    %v229 = vpop.f32.mrf.mxu0
    %v230 = vadd.f32 %v110, %v229
    %v231 = vpop.f32.mrf.mxu0
    %232 = vmatprep.mubr.bf16.mxu0 0
    %233 = vmatmul.mubr.bf16.gmra.mxu0 %v130
    %v234 = vpop.f32.mrf.mxu0
    %v235 = vadd.f32 %v110, %v234
    %v236 = vpop.f32.mrf.mxu0
    %v237 = vpop.f32.mrf.mxu0
    %v238 = vadd.f32 %v110, %v237
    %v239 = vpop.f32.mrf.mxu0
    %240 = vmatprep.mubr.bf16.mxu0 0
    %241 = vmatmul.mubr.bf16.gmra.mxu0 %v131
    %v242 = vpop.f32.mrf.mxu0
    %v243 = vadd.f32 %v110, %v242
    %v244 = vpop.f32.mrf.mxu0
    %v245 = vpop.f32.mrf.mxu0
    %v246 = vadd.f32 %v110, %v245
    %v247 = vpop.f32.mrf.mxu0
    %248 = vdwg.mxu0
    %249 = vst [vmem:[#allocation2] sm:$0xff] %v219
    %250 = vst [vmem:[#allocation2 + $0x8] sm:$0xff] %v222
    %251 = vst [vmem:[#allocation2 + $0x10] sm:$0xff] %v227
    %252 = vst [vmem:[#allocation2 + $0x18] sm:$0xff] %v230
    %253 = vst [vmem:[#allocation2 + $0x20] sm:$0xff] %v235
    %254 = vst [vmem:[#allocation2 + $0x28] sm:$0xff] %v238
    %255 = vst [vmem:[#allocation2 + $0x30] sm:$0xff] %v243
    %256 = vst [vmem:[#allocation2 + $0x38] sm:$0xff] %v246
    %v257 = vld [vmem:[#allocation8] sm:$0xf]
    %v258 = vld [vmem:[#allocation8 + $0x4] sm:$0xf]
    %v259 = vld [vmem:[#allocation8 + $0x8] sm:$0xf]
    %v260 = vld [vmem:[#allocation8 + $0xc] sm:$0xf]
    %v261 = vld [vmem:[#allocation8 + $0x10] sm:$0xf]
    %v262 = vld [vmem:[#allocation8 + $0x14] sm:$0xf]
    %v263 = vld [vmem:[#allocation8 + $0x18] sm:$0xf]
    %v264 = vld [vmem:[#allocation8 + $0x1c] sm:$0xf]
    %v265 = vld [vmem:[#allocation8 + $0x20] sm:$0xf]
    %v266 = vld [vmem:[#allocation8 + $0x24] sm:$0xf]
    %v267 = vld [vmem:[#allocation8 + $0x28] sm:$0xf]
    %v268 = vld [vmem:[#allocation8 + $0x2c] sm:$0xf]
    %v269 = vld [vmem:[#allocation8 + $0x30] sm:$0xf]
    %v270 = vld [vmem:[#allocation8 + $0x34] sm:$0xf]
    %v271 = vld [vmem:[#allocation8 + $0x38] sm:$0xf]
    %v272 = vld [vmem:[#allocation8 + $0x3c] sm:$0xf]
    %v273 = vld [vmem:[#allocation11] sm:$0xff]
    loop: start=0, step=1, limit=8
    $region42: #{tpu_custom_call.1} parent=1 // loop_pre_header
      _
    $region43: #{tpu_custom_call.1} parent=1 // loop_header
      %s275 = sphi 0, %s279
      %p276 = scmp.ge.s32.totalorder %s275, 8
      %v280 = vphi %v273, %v374
    $region44: #{tpu_custom_call.1} parent=1 // loop_header_branch
      %278 = sbr.rel (%p276) target = $region48
    $region45: #{tpu_custom_call.1} parent=1 // loop_body
      %s281 = smul.u32 %s275, 8
      %s282 = scalar_lea.vmem [#allocation2], %s281
      %v283 = vld [vmem:[%s282] sm:$0xff]
      %v284 = vpack.c.bf16 %v280, %v280
      %v301 = vunpack.c.l.b16 %v257
      %v302 = vunpack.c.l.b16 %v258
      %v303 = vunpack.c.l.b16 %v259
      %v304 = vunpack.c.l.b16 %v260
      %v305 = vunpack.c.l.b16 %v261
      %v306 = vunpack.c.l.b16 %v262
      %v307 = vunpack.c.l.b16 %v263
      %v308 = vunpack.c.l.b16 %v264
      %v309 = vunpack.c.l.b16 %v265
      %v310 = vunpack.c.l.b16 %v266
      %v311 = vunpack.c.l.b16 %v267
      %v312 = vunpack.c.l.b16 %v268
      %v313 = vunpack.c.l.b16 %v269
      %v314 = vunpack.c.l.b16 %v270
      %v315 = vunpack.c.l.b16 %v271
      %v316 = vunpack.c.l.b16 %v272
      %v317 = vpack.c.b16 %v302, %v301
      %v318 = vpack.c.b16 %v304, %v303
      %v319 = vpack.c.b16 %v306, %v305
      %v320 = vpack.c.b16 %v308, %v307
      %v321 = vpack.c.b16 %v310, %v309
      %v322 = vpack.c.b16 %v312, %v311
      %v323 = vpack.c.b16 %v314, %v313
      %v324 = vpack.c.b16 %v316, %v315
      %333 = vmatprep.subr.bf16.mxu0 0
      %334 = vmatpush1.bf16.msra.mxu0 %v324
      %335 = vmatprep.subr.bf16.mxu0 0
      %336 = vmatpush1.bf16.msra.mxu0 %v323
      %337 = vmatprep.subr.bf16.mxu0 0
      %338 = vmatpush1.bf16.msra.mxu0 %v322
      %339 = vmatprep.subr.bf16.mxu0 0
      %340 = vmatpush1.bf16.msra.mxu0 %v321
      %341 = vmatprep.subr.bf16.mxu0 0
      %342 = vmatpush1.bf16.msra.mxu0 %v320
      %343 = vmatprep.subr.bf16.mxu0 0
      %344 = vmatpush1.bf16.msra.mxu0 %v319
      %345 = vmatprep.subr.bf16.mxu0 0
      %346 = vmatpush1.bf16.msra.mxu0 %v318
      %347 = vmatprep.subr.bf16.mxu0 0
      %348 = vmatpush1.bf16.msra.mxu0 %v317
      %349 = vmatprep.subr.bf16.mxu0 0
      %350 = vmatpush2.bf16.msra.mxu0 0
      %351 = vmatprep.subr.bf16.mxu0 0
      %352 = vmatpush2.bf16.msra.mxu0 0
      %353 = vmatprep.subr.bf16.mxu0 0
      %354 = vmatpush2.bf16.msra.mxu0 0
      %355 = vmatprep.subr.bf16.mxu0 0
      %356 = vmatpush2.bf16.msra.mxu0 0
      %357 = vmatprep.subr.bf16.mxu0 0
      %358 = vmatpush2.bf16.msra.mxu0 0
      %359 = vmatprep.subr.bf16.mxu0 0
      %360 = vmatpush2.bf16.msra.mxu0 0
      %361 = vmatprep.subr.bf16.mxu0 0
      %362 = vmatpush2.bf16.msra.mxu0 0
      %363 = vmatprep.subr.bf16.mxu0 0
      %364 = vmatpush2.bf16.msra.mxu0 0
      %365 = vmatprep.mubr.bf16.mxu0 0
      %366 = vmatmul.mubr.bf16.gmra.mxu0 %v284
      %v367 = vpop.f32.mrf.mxu0
      %v368 = vadd.f32 0.0, %v367
      %v369 = vpop.f32.mrf.mxu0
      %v370 = vpop.f32.mrf.mxu0
      %v371 = vpop.f32.mrf.mxu0
      %372 = vdwg.mxu0
      %v373 = vadd.f32 %v283, %v368
      %v374 = vtanh.pop %v373
    $region46: #{tpu_custom_call.1} parent=1 // loop_footer
      %s279 = sadd.s32 1, %s275
    $region47: #{tpu_custom_call.1} parent=1 // loop_footer_branch
      %274 = sbr.rel target = $region43
    $region48: #{tpu_custom_call.1} parent=1 // loop_exit
      _
    %375 = vst [vmem:[#allocation11] sm:$0xff] %v280
    // Predicated region
    $region49: #{tpu_custom_call.1} parent=1 // pred_check
      _
    $region50: #{tpu_custom_call.1} parent=1 // pred_check_branch
      %377 = sbr.rel (0) target = $region52
    $region51: #{tpu_custom_call.1} parent=1 // pred_region
      %s379 = ssub.s32 128, 128
      %380 = vsyncadd [#allocation5], %s379
      %s382 = sshll.u32 [#allocation11], 4
      %s383 = int_to_ptr.vmem [resolvable:$true] %s382
      %385 = dma.vmem_to_hbm [thread:$0]  %s383, 128, %s5, [#allocation5]
    $region52: #{tpu_custom_call.1} parent=1 // pred_fallthru
      _
    // Predicated region
    $region53: #{tpu_custom_call.1} parent=1 // pred_check
      _
    $region54: #{tpu_custom_call.1} parent=1 // pred_check_branch
      %387 = sbr.rel (0) target = $region56
    $region55: #{tpu_custom_call.1} parent=1 // pred_region
      %388 = dma.done [#allocation5], 128
    $region56: #{tpu_custom_call.1} parent=1 // pred_fallthru
      _
    %389 = vsyncpa [#allocation4], 1
    %390 = vsyncpa [#allocation7], 1
    %391 = vsyncpa [#allocation10], 1
    %392 = vsyncpa [#allocation5], 1

</llo_original>
